<compile_context>
chip_gen: v6e
topology: v6e:2x2x1
jax: 0.10.0
libtpu: 0.0.40
codegen_flags: <defaults>
</compile_context>

<pallas_src>
import functools
import math

import jax
import jax.numpy as jnp
from jax import lax
from jax.experimental import pallas as pl
from jax.experimental.pallas import tpu as pltpu


_MAX_TOK_TILE = 512                 # rows of output per grid step (upper bound)
_MAX_TILE_BYTES = 4 * 1024 * 1024   # cap on one (tok_tile, emb) output tile
_ONEHOT_MAX_VOCAB = 2048            # one-hot/MXU path only for small vocabularies


def _round_up(x: int, m: int) -> int:
    return ((x + m - 1) // m) * m


def _vmem_budget():
    """Generation-aware VMEM budget (v5e/v6e: 128 MiB, v7x: 64 MiB per TC)."""
    cap = 64 * 1024 * 1024
    try:
        cap = int(pltpu.get_tpu_info().vmem_capacity_bytes)
    except Exception:
        pass  # conservative default works on every generation
    vmem_limit = min((cap * 3) // 4, 100 * 1024 * 1024)
    # Table is conservatively assumed double-buffered by the pipeline, so keep
    # 2*table <= 2/3 of the limit and leave the rest for output buffers/scratch.
    resident_bytes = vmem_limit // 3
    return vmem_limit, resident_bytes


# ---------------------------------------------------------------------------
# Path 1: one-hot matmul (small vocab) — uses the otherwise-idle MXU.
# ---------------------------------------------------------------------------
def _onehot_matmul_kernel(tok_ref, table_ref, out_ref, *, scale, vocab_size,
                          table_dtype):
    # tok_ref:   VMEM (tok_tile, 1) int32
    # table_ref: VMEM (vocab, emb) — constant index map => resident
    # out_ref:   VMEM (tok_tile, emb)
    tok = tok_ref[...]                                            # (tile, 1)
    tile = tok.shape[0]
    col = lax.broadcasted_iota(jnp.int32, (tile, vocab_size), 1)
    one_hot = (col == tok).astype(table_dtype)                    # (tile, vocab)
    acc = jnp.dot(one_hot, table_ref[...], preferred_element_type=jnp.float32)
    out_ref[...] = (acc * scale).astype(out_ref.dtype)


# ---------------------------------------------------------------------------
# Path 2: resident-table gather (medium vocab).
# ---------------------------------------------------------------------------
def _resident_gather_kernel(tok_ref, table_ref, out_ref, *, scale, tok_tile,
                            n_tokens, has_pad):
    # tok_ref:   SMEM (n_padded,) int32 (scalar prefetch)
    # table_ref: VMEM (vocab, emb) — constant index map => resident
    # out_ref:   VMEM (tok_tile, emb)
    base = pl.program_id(0) * tok_tile

    def body(j, carry):
        def gather():
            tok = tok_ref[base + j]                       # scalar read from SMEM
            out_ref[pl.ds(j, 1), :] = table_ref[pl.ds(tok, 1), :]
        if has_pad:
            pl.when(base + j < n_tokens)(gather)          # skip padded tail rows
        else:
            gather()
        return carry

    lax.fori_loop(0, tok_tile, body, 0, unroll=8)
    # One dense full-vreg scale per tile instead of tok_tile masked (1, emb) vmuls.
    out_ref[...] = out_ref[...] * scale


# ---------------------------------------------------------------------------
# Path 3: HBM row-DMA gather (large vocab), double-buffered across grid steps.
# ---------------------------------------------------------------------------
def _hbm_gather_kernel(tok_ref, emb_hbm, out_ref, buf_ref, sem_ref, *,
                       scale, tok_tile):
    # tok_ref: SMEM (n_padded,) int32;  emb_hbm: HBM (vocab, emb) raw ref
    # out_ref: VMEM (tok_tile, emb)
    # buf_ref: VMEM (2, tok_tile, emb) double buffer;  sem_ref: DMA sem (2,)
    step = pl.program_id(0)
    num_steps = pl.num_programs(0)

    def issue_tile(tile_idx, slot):
        base = tile_idx * tok_tile

        def body(j, carry):
            tok = tok_ref[base + j]
            pltpu.make_async_copy(
                emb_hbm.at[pl.ds(tok, 1), :],
                buf_ref.at[slot, pl.ds(j, 1), :],
                sem_ref.at[slot],
            ).start()
            return carry

        # Unrolled so descriptor issue (misc slot) and scalar address math
        # (scalar slots) co-schedule.
        lax.fori_loop(0, tok_tile, body, 0, unroll=8)

    # Prime: the very first tile's gather is issued at step 0.
    @pl.when(step == 0)
    def _():
        issue_tile(0, 0)

    # Prefetch: issue the NEXT tile's row DMAs before waiting on the current one,
    # so the random-row HBM latency overlaps this step's wait/scale/writeback.
    @pl.when(step + 1 < num_steps)
    def _():
        issue_tile(step + 1, (step + 1) % 2)

    slot = step % 2
    # Single aggregate wait: all tok_tile row copies into this slot signalled the
    # same semaphore; one (tok_tile, emb)-sized wait consumes exactly that many
    # bytes (replaces the old per-row wait loop with a mismatched descriptor).
    pltpu.make_async_copy(buf_ref.at[slot], buf_ref.at[slot], sem_ref.at[slot]).wait()

    # One dense, vectorized scale + store for the whole tile.
    out_ref[...] = buf_ref[slot] * scale


# ---------------------------------------------------------------------------
# Wrapper: TokenEmbedding.forward equivalent.
# ---------------------------------------------------------------------------
def token_embedding(tokens: jax.Array, emb_table: jax.Array, *,
                    tok_tile: int | None = None,
                    path: str | None = None) -> jax.Array:
    """emb_table[tokens] * sqrt(emb_size)  (PyTorch TokenEmbedding.forward)."""
    vocab_size, emb_size = emb_table.shape
    dtype = emb_table.dtype
    dsize = jnp.dtype(dtype).itemsize
    scale = float(math.sqrt(emb_size))

    flat = tokens.reshape(-1).astype(jnp.int32)          # tokens.long()
    flat = jnp.clip(flat, 0, vocab_size - 1)             # guard against OOB ids
    n_tokens = int(flat.shape[0])

    vmem_limit, resident_bytes = _vmem_budget()
    table_bytes = vocab_size * emb_size * dsize

    if path is None:
        if vocab_size <= _ONEHOT_MAX_VOCAB and table_bytes <= resident_bytes:
            path = "onehot"
        elif table_bytes <= resident_bytes:
            path = "resident"
        else:
            path = "hbm"

    # Sublane-dense token tile (8 rows for f32, 16 for bf16 packing).
    sublane = 16 if dtype == jnp.bfloat16 else 8
    row_bytes = emb_size * dsize
    if tok_tile is None:
        cap_rows = max(sublane, (_MAX_TILE_BYTES // row_bytes) // sublane * sublane)
        tok_tile = min(_MAX_TOK_TILE, cap_rows, _round_up(n_tokens, sublane))
    tok_tile = max(sublane, _round_up(int(tok_tile), sublane))
    # Keep >= 2 tiles when possible so v7x's two TensorCores both get work on the
    # "parallel"-gridded paths.
    if _round_up(n_tokens, tok_tile) // tok_tile < 2 and tok_tile > sublane:
        tok_tile = max(sublane, _round_up(tok_tile // 2, sublane))

    n_padded = _round_up(n_tokens, tok_tile)
    has_pad = n_padded != n_tokens
    if has_pad:
        flat = jnp.pad(flat, (0, n_padded - n_tokens))
    num_tiles = n_padded // tok_tile

    out_bytes = n_padded * emb_size * dsize

    if path == "onehot":
        cost = pl.CostEstimate(
            flops=2 * n_padded * vocab_size * emb_size,
            transcendentals=0,
            bytes_accessed=table_bytes + out_bytes + 4 * n_padded)
        out_flat = pl.pallas_call(
            functools.partial(_onehot_matmul_kernel, scale=scale,
                              vocab_size=vocab_size, table_dtype=dtype),
            out_shape=jax.ShapeDtypeStruct((n_padded, emb_size), dtype),
            grid=(num_tiles,),
            in_specs=[
                pl.BlockSpec((tok_tile, 1), lambda i: (i, 0)),
                # Whole table, constant index map -> fetched once, resident.
                pl.BlockSpec((vocab_size, emb_size), lambda i: (0, 0)),
            ],
            out_specs=pl.BlockSpec((tok_tile, emb_size), lambda i: (i, 0)),
            compiler_params=pltpu.CompilerParams(
                dimension_semantics=("parallel",),
                vmem_limit_bytes=vmem_limit),
            cost_estimate=cost,
        )(flat.reshape(n_padded, 1), emb_table)

    elif path == "resident":
        cost = pl.CostEstimate(
            flops=n_padded * emb_size,
            transcendentals=0,
            bytes_accessed=table_bytes + out_bytes + 4 * n_padded)
        out_flat = pl.pallas_call(
            functools.partial(_resident_gather_kernel, scale=scale,
                              tok_tile=tok_tile, n_tokens=n_tokens,
                              has_pad=has_pad),
            out_shape=jax.ShapeDtypeStruct((n_padded, emb_size), dtype),
            grid_spec=pltpu.PrefetchScalarGridSpec(
                num_scalar_prefetch=1,                 # token ids land in SMEM
                grid=(num_tiles,),
                in_specs=[
                    pl.BlockSpec((vocab_size, emb_size), lambda i, tok: (0, 0)),
                ],
                out_specs=pl.BlockSpec((tok_tile, emb_size), lambda i, tok: (i, 0)),
            ),
            compiler_params=pltpu.CompilerParams(
                dimension_semantics=("parallel",),
                vmem_limit_bytes=vmem_limit),
            cost_estimate=cost,
        )(flat, emb_table)

    else:  # path == "hbm"
        cost = pl.CostEstimate(
            flops=n_padded * emb_size,
            transcendentals=0,
            bytes_accessed=2 * out_bytes + 4 * n_padded)
        out_flat = pl.pallas_call(
            functools.partial(_hbm_gather_kernel, scale=scale, tok_tile=tok_tile),
            out_shape=jax.ShapeDtypeStruct((n_padded, emb_size), dtype),
            grid_spec=pltpu.PrefetchScalarGridSpec(
                num_scalar_prefetch=1,
                grid=(num_tiles,),
                in_specs=[pl.BlockSpec(memory_space=pl.ANY)],   # table stays in HBM
                out_specs=pl.BlockSpec((tok_tile, emb_size), lambda i, tok: (i, 0)),
                scratch_shapes=[
                    pltpu.VMEM((2, tok_tile, emb_size), dtype),  # double buffer
                    pltpu.SemaphoreType.DMA((2,)),
                ],
            ),
            compiler_params=pltpu.CompilerParams(
                # Cross-step double-buffer state => sequential grid execution.
                dimension_semantics=("arbitrary",),
                vmem_limit_bytes=vmem_limit),
            cost_estimate=cost,
        )(flat, emb_table)

    out_flat = out_flat[:n_tokens]
    return out_flat.reshape(tokens.shape + (emb_size,))


if __name__ == "__main__":
    # Small deterministic setup (shapes implied by the module / typical usage).
    vocab_size, emb_size = 50, 128
    key = jax.random.PRNGKey(0)
    k_emb, k_tok_a, k_tok_b = jax.random.split(key, 3)

    # nn.Embedding weight ~ N(0, 1) by default in PyTorch.
    emb_table = jax.random.normal(k_emb, (vocab_size, emb_size), dtype=jnp.float32)

    def check(tokens, label):
        ref = jnp.take(emb_table, tokens, axis=0) * math.sqrt(float(emb_size))
        for p in ("onehot", "resident", "hbm"):
            out = jax.block_until_ready(token_embedding(tokens, emb_table, path=p))
            assert out.shape == tokens.shape + (emb_size,), (label, p, out.shape)
            assert jnp.allclose(out, ref, atol=1e-5, rtol=1e-5), (label, p)
        # Default path selection (small vocab -> one-hot / MXU path).
        out = jax.block_until_ready(token_embedding(tokens, emb_table))
        assert jnp.allclose(out, ref, atol=1e-5, rtol=1e-5), (label, "default")

    tokens_a = jax.random.randint(k_tok_a, (2, 8), 0, vocab_size, dtype=jnp.int32)
    check(tokens_a, "batch2x8")

    # Ragged token count -> exercises padded-tail handling in every path.
    tokens_b = jax.random.randint(k_tok_b, (3, 5), 0, vocab_size, dtype=jnp.int32)
    check(tokens_b, "batch3x5")

    print("KERNEL_OK")
</pallas_src>

<mosaic_0001>
module attributes {stable_mosaic.version = 11 : i64} {
  func.func @_onehot_matmul_kernel(%arg0: i32, %arg1: memref<8x1xi32, #tpu.memory_space<vmem>>, %arg2: memref<50x128xf32, #tpu.memory_space<vmem>>, %arg3: memref<8x128xf32, #tpu.memory_space<vmem>>) attributes {dimension_semantics = [#tpu.dimension_semantics<parallel>], iteration_bounds = array<i64: 2>, scalar_prefetch = 0 : i64, scratch_operands = 0 : i64, tpu.core_type = #tpu.core_type<tc>, window_params = [{transform_indices = @transform_0, window_bounds = array<i64: 8, 1>}, {pipeline_mode = #tpu.pipeline_mode<synchronous>, transform_indices = @transform_1, window_bounds = array<i64: 50, 128>}, {transform_indices = @transform_2, window_bounds = array<i64: 8, 128>}]} {
    %c0 = arith.constant 0 : index
    %c0_0 = arith.constant 0 : index
    %0 = vector.load %arg1[%c0, %c0_0] : memref<8x1xi32, #tpu.memory_space<vmem>>, vector<8x1xi32>
    %1 = tpu.iota {dimensions = array<i32: 1>} : vector<8x50xi32>
    %2 = vector.broadcast %0 : vector<8x1xi32> to vector<8x50xi32>
    %3 = arith.cmpi eq, %1, %2 : vector<8x50xi32>
    %4 = arith.extui %3 : vector<8x50xi1> to vector<8x50xi32>
    %5 = arith.sitofp %4 : vector<8x50xi32> to vector<8x50xf32>
    %c0_1 = arith.constant 0 : index
    %c0_2 = arith.constant 0 : index
    %6 = vector.load %arg2[%c0_1, %c0_2] : memref<50x128xf32, #tpu.memory_space<vmem>>, vector<50x128xf32>
    %cst = arith.constant dense<0.000000e+00> : vector<8x128xf32>
    %7 = tpu.matmul %5, %6, %cst {dimension_numbers = #tpu.dot_dimension_numbers<[1], [0], [0], [1], [0, 0, 1, 1], [], []>} : vector<8x50xf32>, vector<50x128xf32>, vector<8x128xf32> -> vector<8x128xf32>
    %cst_3 = arith.constant 11.3137083 : f32
    %8 = vector.broadcast %cst_3 : f32 to vector<8x128xf32>
    %9 = arith.mulf %7, %8 : vector<8x128xf32>
    %c0_4 = arith.constant 0 : index
    %c0_5 = arith.constant 0 : index
    %10 = vector.load %arg3[%c0_4, %c0_5] : memref<8x128xf32, #tpu.memory_space<vmem>>, vector<8x128xf32>
    tpu.vector_store %arg3[%c0_4, %c0_5], %9 {strides = array<i32>} : memref<8x128xf32, #tpu.memory_space<vmem>>, vector<8x128xf32>,
    return
  }
  func.func @transform_0(%arg0: i32) -> (i32, i32) {
    %c0_i32 = arith.constant 0 : i32
    %c0_i32_0 = arith.constant 0 : i32
    return %arg0, %c0_i32 : i32, i32
  }
  func.func @transform_1(%arg0: i32) -> (i32, i32) {
    %c0_i32 = arith.constant 0 : i32
    %c0_i32_0 = arith.constant 0 : i32
    %c0_i32_1 = arith.constant 0 : i32
    return %c0_i32, %c0_i32_0 : i32, i32
  }
  func.func @transform_2(%arg0: i32) -> (i32, i32) {
    %c0_i32 = arith.constant 0 : i32
    %c0_i32_0 = arith.constant 0 : i32
    return %arg0, %c0_i32 : i32, i32
  }
}

</mosaic_0001>

<llo_original>
// kernel: tpu_custom_call.1
$region0: #{tpu_custom_call.1}
  #allocation0 [shape = 'u32[]', space=smem, size = 0x4, offset = 0x4, fixed_abs, tag = 'smem constant byte address 0x4 - core index']
  #allocation1 [shape = 'u32[144,128]{1,0:T(1,128)}', space=vmem, size = 0x12000, scoped, tag = 'internal scratch']
  %s0 = inlined_call_operand.vmem [shape: s32[16,1], index: 0, kind: input, shape index: {}]
  %s1 = inlined_call_operand.hbm [shape: f32[50,128], index: 1, kind: input, shape index: {}]
  %s2 = inlined_call_operand.hbm [shape: f32[16,128], index: 2, kind: output, shape index: {}]
  %s3 = sld [smem:[#allocation0]]
  $region45: #{tpu_custom_call.1} parent=0
    _
  %s5 = ssub.s32 1, %s3
  %s6 = scalar_select 0, %s5, %s3
  $region1: #{tpu_custom_call.1} parent=0
    #allocation2 [shape = 'u8[28672]{0}', space=vmem, size = 0x7000, scoped, tag = 'input window, operand 1, single buffered']
    #allocation3 [shape = 's32[2]{0}', space=sflag, size = 0x8, scoped, tag = 'scoped memory for tpu_custom_call.1']
    #allocation4 [shape = 's32[2]{0}', space=sflag, size = 0x8, scoped, tag = 'scoped memory for tpu_custom_call.1']
    #allocation5 [shape = 'u8[8192]{0}', space=vmem, size = 0x2000, scoped, tag = 'output window, operand 0']
    %7 = vsyncpa [#allocation3], 0
    %8 = vsyncpa [#allocation4], 0
    %s9 = scalar_lea.sflag [#allocation4], 1
    %10 = vsyncpa %s9, 0
    loop: start=0, step=1, limit=4
    $region2: #{tpu_custom_call.1} parent=1 // loop_pre_header
      _
    $region3: #{tpu_custom_call.1} parent=1 // loop_header
      %s12 = sphi 0, %s16
      %p13 = scmp.ge.s32.totalorder %s12, 4
      %s22 = sphi 0, %s24
      %s25 = sphi 0, %s22
      %s26 = sphi 0, %s25
      %s42 = sphi 0, %s26
      %s46 = sphi 0, %s46
      %s48 = sphi 0, %s46
      %s49 = sphi 0, %s48
      %s63 = sphi 0, %s49
      %s69 = sphi 0, %s71
      %s72 = sphi 0, %s69
      %s73 = sphi 0, %s72
      %s89 = sphi 0, %s73
    $region4: #{tpu_custom_call.1} parent=1 // loop_header_branch
      %15 = sbr.rel (%p13) target = $region8
    $region5: #{tpu_custom_call.1} parent=1 // loop_body
      %s17 = ssub.s32 %s12, 1
      %s18 = ssub.s32 %s12, 2
      %s19 = sadd.s32 %s12, 1
      %s20 = ssub.s32 %s12, %s19
      %p21 = scmp.eq.s32.totalorder %s20, 0
      %s23 = sadd.s32 %s22, 1
      %s24 = scalar_select %p21, %s22, %s23
      %p27 = pneg %p21
      %p28 = scmp.eq.s32.totalorder %s12, 1
      %p29 = por %p27, %p28
      %p30 = scmp.ne.s32.totalorder %s22, %s25
      %p31 = scmp.eq.s32.totalorder %s12, 0
      %p32 = por %p30, %p31
      %p33 = scmp.ne.s32.totalorder %s22, %s25
      %p34 = scmp.eq.s32.totalorder %s17, 1
      %p35 = por %p33, %p34
      %p36 = scmp.ne.s32.totalorder %s25, %s26
      %p37 = scmp.eq.s32.totalorder %s17, 0
      %p38 = por %p36, %p37
      %p39 = scmp.ne.s32.totalorder %s25, %s26
      %p40 = scmp.eq.s32.totalorder %s18, 1
      %p41 = por %p39, %p40
      %p43 = scmp.ne.s32.totalorder %s26, %s42
      %p44 = scmp.eq.s32.totalorder %s18, 0
      %p45 = por %p43, %p44
      %s47 = sadd.s32 %s46, 1
      %p50 = scmp.eq.s32.totalorder %s12, 1
      %p51 = scmp.ne.s32.totalorder %s46, %s48
      %p52 = scmp.eq.s32.totalorder %s12, 0
      %p53 = por %p51, %p52
      %p54 = scmp.ne.s32.totalorder %s46, %s48
      %p55 = scmp.eq.s32.totalorder %s17, 1
      %p56 = por %p54, %p55
      %p57 = scmp.ne.s32.totalorder %s48, %s49
      %p58 = scmp.eq.s32.totalorder %s17, 0
      %p59 = por %p57, %p58
      %p60 = scmp.ne.s32.totalorder %s48, %s49
      %p61 = scmp.eq.s32.totalorder %s18, 1
      %p62 = por %p60, %p61
      %p64 = scmp.ne.s32.totalorder %s49, %s63
      %p65 = scmp.eq.s32.totalorder %s18, 0
      %p66 = por %p64, %p65
      %s67 = ssub.s32 %s12, %s19
      %p68 = scmp.eq.s32.totalorder %s67, 0
      %s70 = sadd.s32 %s69, 1
      %s71 = scalar_select %p68, %s69, %s70
      %p74 = pneg %p68
      %p75 = scmp.eq.s32.totalorder %s12, 1
      %p76 = por %p74, %p75
      %p77 = scmp.ne.s32.totalorder %s69, %s72
      %p78 = scmp.eq.s32.totalorder %s12, 0
      %p79 = por %p77, %p78
      %p80 = scmp.ne.s32.totalorder %s69, %s72
      %p81 = scmp.eq.s32.totalorder %s17, 1
      %p82 = por %p80, %p81
      %p83 = scmp.ne.s32.totalorder %s72, %s73
      %p84 = scmp.eq.s32.totalorder %s17, 0
      %p85 = por %p83, %p84
      %p86 = scmp.ne.s32.totalorder %s72, %s73
      %p87 = scmp.eq.s32.totalorder %s18, 1
      %p88 = por %p86, %p87
      %p90 = scmp.ne.s32.totalorder %s73, %s89
      %p91 = scmp.eq.s32.totalorder %s18, 0
      %p92 = por %p90, %p91
      %p93 = scmp.le.s32.totalorder 1, %s12
      %p94 = scmp.lt.s32.totalorder %s12, 3
      %p95 = pnand %p93, %p94
      %p96 = pneg %p95
      // Predicated region
      $region9: #{tpu_custom_call.1} parent=5 // pred_check
        _
      $region10: #{tpu_custom_call.1} parent=5 // pred_check_branch
        %98 = sbr.rel (%p95) target = $region12
      $region11: #{tpu_custom_call.1} parent=5 // pred_region
        %s99 = ssub.s32 %s12, 1
        // Predicated region
        $region13: #{tpu_custom_call.1} parent=11 // pred_check
          %p100 = pneg %p59
        $region14: #{tpu_custom_call.1} parent=11 // pred_check_branch
          %102 = sbr.rel (%p100) target = $region16
        $region15: #{tpu_custom_call.1} parent=11 // pred_region
          %s104 = ssub.s32 896, 896
          %105 = vsyncadd [#allocation3], %s104
          %s106 = sshll.u32 [#allocation2], 4
          %s107 = int_to_ptr.vmem [resolvable:$true] %s106
          %112 = dma.hbm_to_vmem [thread:$0]  %s1, 896, %s107, [#allocation3], 128, 128, 8
        $region16: #{tpu_custom_call.1} parent=11 // pred_fallthru
          _
      $region12: #{tpu_custom_call.1} parent=5 // pred_fallthru
        _
      %p113 = scmp.lt.s32.totalorder %s12, 2
      // Predicated region
      $region17: #{tpu_custom_call.1} parent=5 // pred_check
        %p114 = pneg %p113
      $region18: #{tpu_custom_call.1} parent=5 // pred_check_branch
        %116 = sbr.rel (%p114) target = $region20
      $region19: #{tpu_custom_call.1} parent=5 // pred_region
        // Predicated region
        $region21: #{tpu_custom_call.1} parent=19 // pred_check
          %p117 = pneg %p32
        $region22: #{tpu_custom_call.1} parent=19 // pred_check_branch
          %119 = sbr.rel (%p117) target = $region24
        $region23: #{tpu_custom_call.1} parent=19 // pred_region
          %p120 = scmp.lt.s32.totalorder %s12, 1
          %s121 = scalar_select %p120, %s12, 1
          %s122 = smul.addr %s121, 8
          %s123 = scalar_lea.vmem %s0, %s122
        $region24: #{tpu_custom_call.1} parent=19 // pred_fallthru
          _
      $region20: #{tpu_custom_call.1} parent=5 // pred_fallthru
        _
      %p124 = scmp.le.s32.totalorder 1, %s12
      %p125 = scmp.lt.s32.totalorder %s12, 3
      %p126 = pnand %p124, %p125
      %p127 = pneg %p126
      // Predicated region
      $region25: #{tpu_custom_call.1} parent=5 // pred_check
        _
      $region26: #{tpu_custom_call.1} parent=5 // pred_check_branch
        %129 = sbr.rel (%p126) target = $region28
      $region27: #{tpu_custom_call.1} parent=5 // pred_region
        %s130 = ssub.s32 %s12, 1
        // Predicated region
        $region29: #{tpu_custom_call.1} parent=27 // pred_check
          %p131 = pneg %p59
        $region30: #{tpu_custom_call.1} parent=27 // pred_check_branch
          %133 = sbr.rel (%p131) target = $region32
        $region31: #{tpu_custom_call.1} parent=27 // pred_region
          %134 = dma.done [#allocation3], 896
        $region32: #{tpu_custom_call.1} parent=27 // pred_fallthru
          _
        %p135 = scmp.lt.s32.totalorder %s17, 1
        %s136 = scalar_select %p135, %s17, 1
        %s137 = smul.addr %s136, 8
        %s138 = scalar_lea.vmem %s0, %s137
        %p139 = pneg %p38
        %p140 = pneg %p35
        %p141 = pneg %p59
        %p142 = pneg %p56
        %p143 = pneg %p85
        %p144 = pneg %p82
        %s145 = sand.u32 %s72, 1
        %s146 = scalar_lea.sflag [#allocation4], %s145
        %s147 = sand.u32 %s72, 1
        %s148 = smul.addr %s147, 8
        %s149 = scalar_lea.vmem [#allocation5], %s148
        %p150 = scmp.lt.s32.totalorder %s17, 1
        %s151 = scalar_select %p150, %s17, 1
        %s152 = smul.addr %s151, 8
        %s153 = scalar_lea.vmem %s0, %s152
        %v154 = vld [vmem:[%s153] sm:$0xff]
        %v155 = vlaneseq
        %v156 = vand.u32 %v155, 127
        %157 = vset.pattern.permute.xlu0 0
        %158 = vperm.xlu0 %157, %v154
        %v159 = vpop.permute.xlu0 %158
        %vm160 = vcmp.eq.s32.totalorder %v156, %v159
        %v161 = vsel %vm160, 1, 0
        %v162 = vcvt.s32.f32 %v161
        %v163 = vld [vmem:[#allocation2] sm:$0xff]
        %v164 = vld [vmem:[#allocation2 + $0x8] sm:$0xff]
        %v165 = vld [vmem:[#allocation2 + $0x10] sm:$0xff]
        %v166 = vld [vmem:[#allocation2 + $0x18] sm:$0xff]
        %v167 = vld [vmem:[#allocation2 + $0x20] sm:$0xff]
        %v168 = vld [vmem:[#allocation2 + $0x28] sm:$0xff]
        %v169 = vld [vmem:[#allocation2 + $0x30] sm:$0x3]
        %vm170 = vcmask 408576
        %v172 = vsel %vm170, %v162, 0
        %vm174 = vcmask 1041408
        %v176 = vsel %vm174, %v169, 0
        %178 = vmatprep.subr.mxu0 0.0
        %179 = vmatpush1.msra.mxu0 0.0
        %180 = vmatprep.subr.mxu0 0.0
        %181 = vmatpush1.msra.mxu0 0.0
        %182 = vmatprep.subr.mxu0 0.0
        %183 = vmatpush1.msra.mxu0 0.0
        %184 = vmatprep.subr.mxu0 0.0
        %185 = vmatpush1.msra.mxu0 0.0
        %186 = vmatprep.subr.mxu0 0.0
        %187 = vmatpush1.msra.mxu0 0.0
        %188 = vmatprep.subr.mxu0 0.0
        %189 = vmatpush1.msra.mxu0 0.0
        %190 = vmatprep.subr.mxu0 0.0
        %191 = vmatpush1.msra.mxu0 0.0
        %192 = vmatprep.subr.mxu0 0.0
        %193 = vmatpush1.msra.mxu0 0.0
        %194 = vmatprep.subr.mxu0 0.0
        %195 = vmatpush1.msra.mxu0 0.0
        %196 = vmatprep.subr.mxu0 0.0
        %197 = vmatpush1.msra.mxu0 %v176
        %198 = vmatprep.subr.mxu0 0.0
        %199 = vmatpush1.msra.mxu0 %v168
        %200 = vmatprep.subr.mxu0 0.0
        %201 = vmatpush1.msra.mxu0 %v167
        %202 = vmatprep.subr.mxu0 0.0
        %203 = vmatpush1.msra.mxu0 %v166
        %204 = vmatprep.subr.mxu0 0.0
        %205 = vmatpush1.msra.mxu0 %v165
        %206 = vmatprep.subr.mxu0 0.0
        %207 = vmatpush1.msra.mxu0 %v164
        %208 = vmatprep.subr.mxu0 0.0
        %209 = vmatpush1.msra.mxu0 %v163
        %210 = vmatprep.subr.mxu0 0.0
        %211 = vmatpush2.msra.mxu0 0.0
        %212 = vmatprep.subr.mxu0 0.0
        %213 = vmatpush2.msra.mxu0 0.0
        %214 = vmatprep.subr.mxu0 0.0
        %215 = vmatpush2.msra.mxu0 0.0
        %216 = vmatprep.subr.mxu0 0.0
        %217 = vmatpush2.msra.mxu0 0.0
        %218 = vmatprep.subr.mxu0 0.0
        %219 = vmatpush2.msra.mxu0 0.0
        %220 = vmatprep.subr.mxu0 0.0
        %221 = vmatpush2.msra.mxu0 0.0
        %222 = vmatprep.subr.mxu0 0.0
        %223 = vmatpush2.msra.mxu0 0.0
        %224 = vmatprep.subr.mxu0 0.0
        %225 = vmatpush2.msra.mxu0 0.0
        %226 = vmatprep.subr.mxu0 0.0
        %227 = vmatpush2.msra.mxu0 0.0
        %228 = vmatprep.subr.mxu0 0.0
        %229 = vmatpush2.msra.mxu0 0.0
        %230 = vmatprep.subr.mxu0 0.0
        %231 = vmatpush2.msra.mxu0 0.0
        %232 = vmatprep.subr.mxu0 0.0
        %233 = vmatpush2.msra.mxu0 0.0
        %234 = vmatprep.subr.mxu0 0.0
        %235 = vmatpush2.msra.mxu0 0.0
        %236 = vmatprep.subr.mxu0 0.0
        %237 = vmatpush2.msra.mxu0 0.0
        %238 = vmatprep.subr.mxu0 0.0
        %239 = vmatpush2.msra.mxu0 0.0
        %240 = vmatprep.subr.mxu0 0.0
        %241 = vmatpush2.msra.mxu0 0.0
        %242 = vmatprep.mubr.f32.mxu0 0.0
        %243 = vmatmul.mubr.f32.gmra.mxu0 %v172
        %v244 = vpop.f32.mrf.mxu0
        %v245 = vadd.f32 0.0, %v244
        %v246 = vpop.f32.mrf.mxu0
        %247 = vdwg.mxu0
        %v248 = vmul.f32 %v245, 11.313708
        %249 = vst [vmem:[%s149] sm:$0xff] %v248
        %s250 = sand.u32 %s72, 1
        %s251 = scalar_lea.sflag [#allocation4], %s250
        %s252 = sand.u32 %s72, 1
        %s253 = smul.addr %s252, 8
        %s254 = scalar_lea.vmem [#allocation5], %s253
        // Predicated region
        $region33: #{tpu_custom_call.1} parent=27 // pred_check
          %p255 = pneg %p82
        $region34: #{tpu_custom_call.1} parent=27 // pred_check_branch
          %257 = sbr.rel (%p255) target = $region36
        $region35: #{tpu_custom_call.1} parent=27 // pred_region
          %s259 = ssub.s32 128, 128
          %260 = vsyncadd %s251, %s259
          %s261 = smul.addr %s17, 128
          %s262 = scalar_lea.hbm %s2, %s261
          %s264 = sshll.u32 %s254, 4
          %s265 = int_to_ptr.vmem [resolvable:$true] %s264
          %267 = dma.vmem_to_hbm [thread:$0]  %s265, 128, %s262, %s251
        $region36: #{tpu_custom_call.1} parent=27 // pred_fallthru
          _
      $region28: #{tpu_custom_call.1} parent=5 // pred_fallthru
        _
      %p268 = scmp.le.s32.totalorder 2, %s12
      // Predicated region
      $region37: #{tpu_custom_call.1} parent=5 // pred_check
        %p269 = pneg %p268
      $region38: #{tpu_custom_call.1} parent=5 // pred_check_branch
        %271 = sbr.rel (%p269) target = $region40
      $region39: #{tpu_custom_call.1} parent=5 // pred_region
        %s272 = ssub.s32 %s12, 2
        // Predicated region
        $region41: #{tpu_custom_call.1} parent=39 // pred_check
          %p273 = pneg %p88
        $region42: #{tpu_custom_call.1} parent=39 // pred_check_branch
          %275 = sbr.rel (%p273) target = $region44
        $region43: #{tpu_custom_call.1} parent=39 // pred_region
          %s276 = sand.u32 %s73, 1
          %s277 = scalar_lea.sflag [#allocation4], %s276
          %s278 = sand.u32 %s73, 1
          %s279 = smul.addr %s278, 8
          %s280 = scalar_lea.vmem [#allocation5], %s279
          %281 = dma.done %s277, 128
        $region44: #{tpu_custom_call.1} parent=39 // pred_fallthru
          _
      $region40: #{tpu_custom_call.1} parent=5 // pred_fallthru
        _
    $region6: #{tpu_custom_call.1} parent=1 // loop_footer
      %s16 = sadd.s32 1, %s12
    $region7: #{tpu_custom_call.1} parent=1 // loop_footer_branch
      %11 = sbr.rel target = $region3
    $region8: #{tpu_custom_call.1} parent=1 // loop_exit
      _
    %282 = vsyncpa [#allocation3], 1
    %s283 = scalar_lea.sflag [#allocation3], 1
    %284 = vsyncpa %s283, 1
    %285 = vsyncpa [#allocation4], 1
    %s286 = scalar_lea.sflag [#allocation4], 1
    %287 = vsyncpa %s286, 1

</llo_original>
